<compile_context>
chip_gen: v5e
topology: v5e:2x2
jax: 0.10.0
libtpu: 0.0.40
codegen_flags: <defaults>
</compile_context>

<pallas_src>
import functools

import jax
import jax.numpy as jnp
from jax.experimental import pallas as pl
from jax.experimental.pallas import tpu as pltpu


def _reward_criterion_kernel(inp_ref, seq_ref, rew_ref, num_ref, den_ref, *,
                             batch, tile_b, tiles_per_split, need_row_mask):
    i = pl.program_id(1)

    @pl.when(i == 0)
    def _init():
        num_ref[...] = jnp.zeros_like(num_ref)
        den_ref[...] = jnp.zeros_like(den_ref)

    seq = seq_ref[...]                                  # (tile_b, L), native int dtype

    # Shift token ids right along the sequence axis (XLU lane rotation, the
    # otherwise-idle unit).  The wrapped-around lane 0 is forced on below.
    shifted = pltpu.roll(seq, shift=1, axis=1)

    col = jax.lax.broadcasted_iota(jnp.int32, seq.shape, 1)
    pred = jnp.logical_or(col == 0, shifted > 0)
    # TODO(synk): a precomputed (1, L) first-column lane mask kept VMEM-resident
    # would shave ~1 VALU op/vreg on v7x; skipped (noise on HBM-bound v5e/v6e).

    if need_row_mask:
        # Only traced when the batch is ragged w.r.t. the tile / core split.
        c = pl.program_id(0)
        t = c * tiles_per_split + i                     # logical (unclamped) tile index
        row = jax.lax.broadcasted_iota(jnp.int32, seq.shape, 0)
        pred = jnp.logical_and(pred, (t * tile_b + row) < batch)

    prod = (inp_ref[...] * rew_ref[...]).astype(jnp.float32)
    # Keep it a select (never multiply-by-mask) so NaN/Inf in padded rows of a
    # partial / out-of-range tile can never leak into the sums.
    weighted = jnp.where(pred, prod, jnp.float32(0.0))
    ones = jnp.where(pred, jnp.float32(1.0), jnp.float32(0.0))

    g = tile_b // 8
    length = seq.shape[1]
    # (tile_b, L) -> (g, 8, L) is a layout-preserving sublane-group split; the
    # sum over g is vreg-wise VALU adds.  The single XLU/cross-lane reduce is
    # deferred to the wrapper.
    num_ref[...] += jnp.sum(weighted.reshape(g, 8, length), axis=0)[None]
    den_ref[...] += jnp.sum(ones.reshape(g, 8, length), axis=0)[None]


def reward_criterion(inp, seq, reward, tile_b=None):
    """inp: (B, L) f32 log-probs; seq: (B, L) int tokens (0 = pad); reward: (B, L) f32."""
    B, L = inp.shape

    bytes_per_row = L * (inp.dtype.itemsize + seq.dtype.itemsize + reward.dtype.itemsize)

    # Generation-aware VMEM budget (v5e/v6e: 128 MiB physical, v7x: 64 MiB).
    try:
        vmem_cap = int(pltpu.get_tpu_info().vmem_capacity_bytes)
    except Exception:  # conservative fallback if the query is unavailable
        vmem_cap = 64 << 20
    tile_budget = int(min(max(vmem_cap // 4, 8 << 20), 24 << 20))

    if tile_b is None:
        max_rows = max(8, (tile_budget // (2 * bytes_per_row)) // 8 * 8)
        # Aim for >= 2 tiles once B >= 16 so both v7x TensorCores get work.
        if B >= 16:
            want = ((pl.cdiv(B, 2) + 7) // 8) * 8
        else:
            want = ((B + 7) // 8) * 8
        tile_b = max(8, min(max_rows, want))
    tile_b = max(8, ((tile_b + 7) // 8) * 8)

    num_tiles = pl.cdiv(B, tile_b)
    num_splits = 2 if num_tiles >= 2 else 1          # 2-way TC split (pays on v7x)
    tiles_per_split = pl.cdiv(num_tiles, num_splits)
    clamp_needed = num_splits * tiles_per_split != num_tiles
    need_row_mask = (B % tile_b != 0) or clamp_needed

    def in_map(c, i):
        t = c * tiles_per_split + i
        if clamp_needed:
            # Duplicated (clamped) block is fully excluded by the row mask.
            t = jnp.minimum(t, num_tiles - 1)
        return (t, 0)

    def out_map(c, i):
        return (c, 0, 0)

    vmem_need = 2 * tile_b * bytes_per_row + 4 * 8 * L * 4 + (2 << 20)
    vmem_limit = int(min(max(vmem_need, 4 << 20), vmem_cap * 3 // 4))

    kernel = functools.partial(
        _reward_criterion_kernel, batch=B, tile_b=tile_b,
        tiles_per_split=tiles_per_split, need_row_mask=need_row_mask)

    num_p, den_p = pl.pallas_call(
        kernel,
        out_shape=(
            jax.ShapeDtypeStruct((num_splits, 8, L), jnp.float32),
            jax.ShapeDtypeStruct((num_splits, 8, L), jnp.float32),
        ),
        grid_spec=pltpu.PrefetchScalarGridSpec(
            num_scalar_prefetch=0,
            grid=(num_splits, tiles_per_split),
            in_specs=[
                pl.BlockSpec((tile_b, L), in_map),
                pl.BlockSpec((tile_b, L), in_map),
                pl.BlockSpec((tile_b, L), in_map),
            ],
            out_specs=(
                pl.BlockSpec((1, 8, L), out_map),
                pl.BlockSpec((1, 8, L), out_map),
            ),
        ),
        compiler_params=pltpu.CompilerParams(
            dimension_semantics=("parallel", "arbitrary"),
            vmem_limit_bytes=vmem_limit,
        ),
        cost_estimate=pl.CostEstimate(
            flops=4 * B * L,
            transcendentals=0,
            bytes_accessed=B * bytes_per_row + 2 * num_splits * 8 * L * 4,
        ),
    )(inp, seq, reward)

    # One cross-lane/sublane reduction + divide, once, outside the kernel.
    return -(jnp.sum(num_p) / jnp.sum(den_p))


def reward_criterion_ref(inp, seq, reward):
    mask = (seq > 0).astype(jnp.float32)
    mask = jnp.concatenate(
        [jnp.ones((seq.shape[0], 1), jnp.float32), mask[:, :-1]], axis=1)
    out = -inp * reward * mask
    return jnp.sum(out) / jnp.sum(mask)


if __name__ == "__main__":
    key = jax.random.PRNGKey(0)
    k1, k2, k3 = jax.random.split(key, 3)

    # Small shape matching the module's (batch, seq_len) layout.
    B, L = 8, 128
    inp = jax.random.normal(k1, (B, L), dtype=jnp.float32)        # gathered log-probs
    seq = jax.random.randint(k2, (B, L), 0, 5, dtype=jnp.int32)   # sampled tokens (0 = pad)
    reward = jax.random.normal(k3, (B, L), dtype=jnp.float32)     # per-token reward

    loss = jax.block_until_ready(reward_criterion(inp, seq, reward))
    ref = jax.block_until_ready(reward_criterion_ref(inp, seq, reward))
    assert jnp.allclose(loss, ref, rtol=1e-5, atol=1e-5), (loss, ref)

    # Ragged batch: multiple tiles per core, clamped duplicate block, partial tile.
    B2 = 20
    k4, k5, k6 = jax.random.split(k3, 3)
    inp2 = jax.random.normal(k4, (B2, L), dtype=jnp.float32)
    seq2 = jax.random.randint(k5, (B2, L), 0, 5, dtype=jnp.int32)
    rew2 = jax.random.normal(k6, (B2, L), dtype=jnp.float32)
    loss2 = jax.block_until_ready(reward_criterion(inp2, seq2, rew2, tile_b=8))
    ref2 = jax.block_until_ready(reward_criterion_ref(inp2, seq2, rew2))
    assert jnp.allclose(loss2, ref2, rtol=1e-5, atol=1e-5), (loss2, ref2)

    # Evenly divisible batch: no row mask, default tiles, 2-way core split.
    B3 = 32
    k7, k8, k9 = jax.random.split(k6, 3)
    inp3 = jax.random.normal(k7, (B3, L), dtype=jnp.float32)
    seq3 = jax.random.randint(k8, (B3, L), 0, 5, dtype=jnp.int32)
    rew3 = jax.random.normal(k9, (B3, L), dtype=jnp.float32)
    loss3 = jax.block_until_ready(reward_criterion(inp3, seq3, rew3))
    ref3 = jax.block_until_ready(reward_criterion_ref(inp3, seq3, rew3))
    assert jnp.allclose(loss3, ref3, rtol=1e-5, atol=1e-5), (loss3, ref3)

    print("KERNEL_OK")
</pallas_src>

<mosaic_0001>
module attributes {stable_mosaic.version = 11 : i64} {
  func.func @_reward_criterion_kernel(%arg0: i32, %arg1: i32, %arg2: memref<8x128xf32, #tpu.memory_space<vmem>>, %arg3: memref<8x128xi32, #tpu.memory_space<vmem>>, %arg4: memref<8x128xf32, #tpu.memory_space<vmem>>, %arg5: memref<1x8x128xf32, #tpu.memory_space<vmem>>, %arg6: memref<1x8x128xf32, #tpu.memory_space<vmem>>) attributes {dimension_semantics = [#tpu.dimension_semantics<parallel>, #tpu.dimension_semantics<arbitrary>], iteration_bounds = array<i64: 1, 1>, scalar_prefetch = 0 : i64, scratch_operands = 0 : i64, tpu.core_type = #tpu.core_type<tc>, window_params = [{transform_indices = @transform_0, window_bounds = array<i64: 8, 128>}, {transform_indices = @transform_1, window_bounds = array<i64: 8, 128>}, {transform_indices = @transform_2, window_bounds = array<i64: 8, 128>}, {transform_indices = @transform_3, window_bounds = array<i64: 1, 8, 128>}, {transform_indices = @transform_4, window_bounds = array<i64: 1, 8, 128>}]} {
    %c0_i32 = arith.constant 0 : i32
    %0 = arith.cmpi eq, %arg1, %c0_i32 : i32
    %1 = arith.extui %0 : i1 to i32
    %c0_i32_0 = arith.constant 0 : i32
    %2 = arith.cmpi ne, %1, %c0_i32_0 : i32
    scf.if %2 {
      %cst_24 = arith.constant 0.000000e+00 : f32
      %31 = vector.broadcast %cst_24 : f32 to vector<1x8x128xf32>
      %c0_25 = arith.constant 0 : index
      %c0_26 = arith.constant 0 : index
      %c0_27 = arith.constant 0 : index
      %32 = vector.load %arg5[%c0_25, %c0_26, %c0_27] : memref<1x8x128xf32, #tpu.memory_space<vmem>>, vector<1x8x128xf32>
      tpu.vector_store %arg5[%c0_25, %c0_26, %c0_27], %31 {strides = array<i32>} : memref<1x8x128xf32, #tpu.memory_space<vmem>>, vector<1x8x128xf32>,
      %cst_28 = arith.constant 0.000000e+00 : f32
      %33 = vector.broadcast %cst_28 : f32 to vector<1x8x128xf32>
      %c0_29 = arith.constant 0 : index
      %c0_30 = arith.constant 0 : index
      %c0_31 = arith.constant 0 : index
      %34 = vector.load %arg6[%c0_29, %c0_30, %c0_31] : memref<1x8x128xf32, #tpu.memory_space<vmem>>, vector<1x8x128xf32>
      tpu.vector_store %arg6[%c0_29, %c0_30, %c0_31], %33 {strides = array<i32>} : memref<1x8x128xf32, #tpu.memory_space<vmem>>, vector<1x8x128xf32>,
    } else {
    }
    %c0 = arith.constant 0 : index
    %c0_1 = arith.constant 0 : index
    %3 = vector.load %arg3[%c0, %c0_1] : memref<8x128xi32, #tpu.memory_space<vmem>>, vector<8x128xi32>
    %c1_i32 = arith.constant 1 : i32
    %4 = tpu.dynamic_rotate %3 by %c1_i32 dim 1 : vector<8x128xi32>, i32 -> vector<8x128xi32>
    %5 = tpu.iota {dimensions = array<i32: 1>} : vector<8x128xi32>
    %c0_i32_2 = arith.constant 0 : i32
    %6 = vector.broadcast %c0_i32_2 : i32 to vector<8x128xi32>
    %7 = arith.cmpi eq, %5, %6 : vector<8x128xi32>
    %c0_i32_3 = arith.constant 0 : i32
    %8 = vector.broadcast %c0_i32_3 : i32 to vector<8x128xi32>
    %9 = arith.cmpi sgt, %4, %8 : vector<8x128xi32>
    %10 = arith.ori %7, %9 : vector<8x128xi1>
    %c0_4 = arith.constant 0 : index
    %c0_5 = arith.constant 0 : index
    %11 = vector.load %arg2[%c0_4, %c0_5] : memref<8x128xf32, #tpu.memory_space<vmem>>, vector<8x128xf32>
    %c0_6 = arith.constant 0 : index
    %c0_7 = arith.constant 0 : index
    %12 = vector.load %arg4[%c0_6, %c0_7] : memref<8x128xf32, #tpu.memory_space<vmem>>, vector<8x128xf32>
    %13 = arith.mulf %11, %12 : vector<8x128xf32>
    %cst = arith.constant 0.000000e+00 : f32
    %14 = vector.broadcast %cst : f32 to vector<8x128xf32>
    %15 = arith.select %10, %13, %14 : vector<8x128xi1>, vector<8x128xf32>
    %cst_8 = arith.constant 1.000000e+00 : f32
    %cst_9 = arith.constant 0.000000e+00 : f32
    %16 = vector.broadcast %cst_8 : f32 to vector<8x128xf32>
    %17 = vector.broadcast %cst_9 : f32 to vector<8x128xf32>
    %18 = arith.select %10, %16, %17 : vector<8x128xi1>, vector<8x128xf32>
    %c0_10 = arith.constant 0 : index
    %c0_11 = arith.constant 0 : index
    %c0_12 = arith.constant 0 : index
    %19 = vector.load %arg5[%c0_10, %c0_11, %c0_12] : memref<1x8x128xf32, #tpu.memory_space<vmem>>, vector<1x8x128xf32>
    %20 = vector.shape_cast %15 : vector<8x128xf32> to vector<1x8x128xf32>
    %cst_13 = arith.constant dense<0.000000e+00> : vector<8x128xf32>
    %21 = vector.multi_reduction <add>, %20, %cst_13 [0] : vector<1x8x128xf32> to vector<8x128xf32>
    %22 = vector.shape_cast %21 : vector<8x128xf32> to vector<1x8x128xf32>
    %23 = arith.addf %19, %22 : vector<1x8x128xf32>
    %c0_14 = arith.constant 0 : index
    %c0_15 = arith.constant 0 : index
    %c0_16 = arith.constant 0 : index
    %24 = vector.load %arg5[%c0_14, %c0_15, %c0_16] : memref<1x8x128xf32, #tpu.memory_space<vmem>>, vector<1x8x128xf32>
    tpu.vector_store %arg5[%c0_14, %c0_15, %c0_16], %23 {strides = array<i32>} : memref<1x8x128xf32, #tpu.memory_space<vmem>>, vector<1x8x128xf32>,
    %c0_17 = arith.constant 0 : index
    %c0_18 = arith.constant 0 : index
    %c0_19 = arith.constant 0 : index
    %25 = vector.load %arg6[%c0_17, %c0_18, %c0_19] : memref<1x8x128xf32, #tpu.memory_space<vmem>>, vector<1x8x128xf32>
    %26 = vector.shape_cast %18 : vector<8x128xf32> to vector<1x8x128xf32>
    %cst_20 = arith.constant dense<0.000000e+00> : vector<8x128xf32>
    %27 = vector.multi_reduction <add>, %26, %cst_20 [0] : vector<1x8x128xf32> to vector<8x128xf32>
    %28 = vector.shape_cast %27 : vector<8x128xf32> to vector<1x8x128xf32>
    %29 = arith.addf %25, %28 : vector<1x8x128xf32>
    %c0_21 = arith.constant 0 : index
    %c0_22 = arith.constant 0 : index
    %c0_23 = arith.constant 0 : index
    %30 = vector.load %arg6[%c0_21, %c0_22, %c0_23] : memref<1x8x128xf32, #tpu.memory_space<vmem>>, vector<1x8x128xf32>
    tpu.vector_store %arg6[%c0_21, %c0_22, %c0_23], %29 {strides = array<i32>} : memref<1x8x128xf32, #tpu.memory_space<vmem>>, vector<1x8x128xf32>,
    return
  }
  func.func @transform_0(%arg0: i32, %arg1: i32) -> (i32, i32) {
    %c1_i32 = arith.constant 1 : i32
    %0 = arith.muli %arg0, %c1_i32 : i32
    %1 = arith.addi %0, %arg1 : i32
    %c0_i32 = arith.constant 0 : i32
    %c0_i32_0 = arith.constant 0 : i32
    return %1, %c0_i32 : i32, i32
  }
  func.func @transform_1(%arg0: i32, %arg1: i32) -> (i32, i32) {
    %c1_i32 = arith.constant 1 : i32
    %0 = arith.muli %arg0, %c1_i32 : i32
    %1 = arith.addi %0, %arg1 : i32
    %c0_i32 = arith.constant 0 : i32
    %c0_i32_0 = arith.constant 0 : i32
    return %1, %c0_i32 : i32, i32
  }
  func.func @transform_2(%arg0: i32, %arg1: i32) -> (i32, i32) {
    %c1_i32 = arith.constant 1 : i32
    %0 = arith.muli %arg0, %c1_i32 : i32
    %1 = arith.addi %0, %arg1 : i32
    %c0_i32 = arith.constant 0 : i32
    %c0_i32_0 = arith.constant 0 : i32
    return %1, %c0_i32 : i32, i32
  }
  func.func @transform_3(%arg0: i32, %arg1: i32) -> (i32, i32, i32) {
    %c0_i32 = arith.constant 0 : i32
    %c0_i32_0 = arith.constant 0 : i32
    %c0_i32_1 = arith.constant 0 : i32
    return %arg0, %c0_i32, %c0_i32_0 : i32, i32, i32
  }
  func.func @transform_4(%arg0: i32, %arg1: i32) -> (i32, i32, i32) {
    %c0_i32 = arith.constant 0 : i32
    %c0_i32_0 = arith.constant 0 : i32
    %c0_i32_1 = arith.constant 0 : i32
    return %arg0, %c0_i32, %c0_i32_0 : i32, i32, i32
  }
}

</mosaic_0001>

<llo_original>
// kernel: tpu_custom_call.1
$region0: #{tpu_custom_call.1}
  #allocation0 [shape = 'u32[]', space=smem, size = 0x4, offset = 0x4, fixed_abs, tag = 'smem constant byte address 0x4 - core index']
  #allocation1 [shape = 'u32[72,128]{1,0:T(1,128)}', space=vmem, size = 0x9000, scoped, tag = 'internal scratch']
  %s0 = inlined_call_operand.hbm [shape: f32[8,128], index: 0, kind: input, shape index: {}]
  %s1 = inlined_call_operand.hbm [shape: s32[8,128], index: 1, kind: input, shape index: {}]
  %s2 = inlined_call_operand.hbm [shape: f32[8,128], index: 2, kind: input, shape index: {}]
  %s3 = inlined_call_operand.hbm [shape: f32[1,8,128], index: 3, kind: output, shape index: {0}]
  %s4 = inlined_call_operand.hbm [shape: f32[1,8,128], index: 4, kind: output, shape index: {1}]
  %5 = xla_tuple %s3, %s4
  %s6 = sld [smem:[#allocation0]]
  $region46: #{tpu_custom_call.1} parent=0
    _
  %s8 = ssub.s32 1, %s6
  %s9 = scalar_select 0, %s8, %s6
  $region1: #{tpu_custom_call.1} parent=0
    #allocation2 [shape = 'u8[4096]{0}', space=vmem, size = 0x1000, scoped, tag = 'input window, operand 0, single buffered']
    #allocation3 [shape = 's32[1]{0}', space=sflag, size = 0x4, scoped, tag = 'scoped memory for tpu_custom_call.1']
    #allocation4 [shape = 's32[1]{0}', space=sflag, size = 0x4, scoped, tag = 'scoped memory for tpu_custom_call.1']
    #allocation5 [shape = 'u8[4096]{0}', space=vmem, size = 0x1000, scoped, tag = 'input window, operand 1, single buffered']
    #allocation6 [shape = 's32[1]{0}', space=sflag, size = 0x4, scoped, tag = 'scoped memory for tpu_custom_call.1']
    #allocation7 [shape = 'u8[4096]{0}', space=vmem, size = 0x1000, scoped, tag = 'input window, operand 2, single buffered']
    #allocation8 [shape = 'u8[4096]{0}', space=vmem, size = 0x1000, scoped, tag = 'output window, operand 0, single buffered']
    #allocation9 [shape = 'u8[4096]{0}', space=vmem, size = 0x1000, scoped, tag = 'output window, operand 1, single buffered']
    #allocation10 [shape = 's32[1]{0}', space=sflag, size = 0x4, scoped, tag = 'scoped memory for tpu_custom_call.1']
    %10 = vsyncpa [#allocation3], 0
    %11 = vsyncpa [#allocation6], 0
    %12 = vsyncpa [#allocation4], 0
    %13 = vsyncpa [#allocation10], 0
    // Predicated region
    $region2: #{tpu_custom_call.1} parent=1 // pred_check
      _
    $region3: #{tpu_custom_call.1} parent=1 // pred_check_branch
      %15 = sbr.rel (0) target = $region5
    $region4: #{tpu_custom_call.1} parent=1 // pred_region
      %s16 = sadd.s32 0, 0
      %18 = vsyncadd [#allocation3], 0
      %s19 = smul.addr %s16, 8
      %s20 = scalar_lea.hbm %s0, %s19
      %s22 = sshll.u32 %s20, 4
      %s23 = int_to_ptr.hbm [resolvable:$true] %s22
      %s24 = sshll.u32 [#allocation2], 4
      %s25 = int_to_ptr.vmem [resolvable:$true] %s24
      %27 = dma.hbm_to_vmem [thread:$0]  %s23, 128, %s25, [#allocation3]
    $region5: #{tpu_custom_call.1} parent=1 // pred_fallthru
      _
    // Predicated region
    $region6: #{tpu_custom_call.1} parent=1 // pred_check
      _
    $region7: #{tpu_custom_call.1} parent=1 // pred_check_branch
      %29 = sbr.rel (0) target = $region9
    $region8: #{tpu_custom_call.1} parent=1 // pred_region
      %s30 = sadd.s32 0, 0
      %32 = vsyncadd [#allocation6], 0
      %s33 = smul.addr %s30, 8
      %s34 = scalar_lea.hbm %s1, %s33
      %s36 = sshll.u32 %s34, 4
      %s37 = int_to_ptr.hbm [resolvable:$true] %s36
      %s38 = sshll.u32 [#allocation5], 4
      %s39 = int_to_ptr.vmem [resolvable:$true] %s38
      %41 = dma.hbm_to_vmem [thread:$0]  %s37, 128, %s39, [#allocation6]
    $region9: #{tpu_custom_call.1} parent=1 // pred_fallthru
      _
    // Predicated region
    $region10: #{tpu_custom_call.1} parent=1 // pred_check
      _
    $region11: #{tpu_custom_call.1} parent=1 // pred_check_branch
      %43 = sbr.rel (0) target = $region13
    $region12: #{tpu_custom_call.1} parent=1 // pred_region
      %s44 = sadd.s32 0, 0
      %46 = vsyncadd [#allocation6], 0
      %s47 = smul.addr %s44, 8
      %s48 = scalar_lea.hbm %s2, %s47
      %s50 = sshll.u32 %s48, 4
      %s51 = int_to_ptr.hbm [resolvable:$true] %s50
      %s52 = sshll.u32 [#allocation7], 4
      %s53 = int_to_ptr.vmem [resolvable:$true] %s52
      %55 = dma.hbm_to_vmem [thread:$0]  %s51, 128, %s53, [#allocation6]
    $region13: #{tpu_custom_call.1} parent=1 // pred_fallthru
      _
    // Predicated region
    $region14: #{tpu_custom_call.1} parent=1 // pred_check
      _
    $region15: #{tpu_custom_call.1} parent=1 // pred_check_branch
      %57 = sbr.rel (0) target = $region17
    $region16: #{tpu_custom_call.1} parent=1 // pred_region
      %59 = dma.done [#allocation3], 128
    $region17: #{tpu_custom_call.1} parent=1 // pred_fallthru
      _
    // Predicated region
    $region18: #{tpu_custom_call.1} parent=1 // pred_check
      _
    $region19: #{tpu_custom_call.1} parent=1 // pred_check_branch
      %61 = sbr.rel (0) target = $region21
    $region20: #{tpu_custom_call.1} parent=1 // pred_region
      %63 = dma.done [#allocation6], 128
    $region21: #{tpu_custom_call.1} parent=1 // pred_fallthru
      _
    // Predicated region
    $region22: #{tpu_custom_call.1} parent=1 // pred_check
      _
    $region23: #{tpu_custom_call.1} parent=1 // pred_check_branch
      %65 = sbr.rel (0) target = $region25
    $region24: #{tpu_custom_call.1} parent=1 // pred_region
      %67 = dma.done [#allocation6], 128
    $region25: #{tpu_custom_call.1} parent=1 // pred_fallthru
      _
    %s68 = sadd.s32 0, 0
    %s69 = sadd.s32 0, 0
    %s70 = sadd.s32 0, 0
    %p71 = scmp.eq.s32.totalorder 0, 0
    // Predicated region
    $region26: #{tpu_custom_call.1} parent=1 // pred_check
      %p72 = pneg %p71
    $region27: #{tpu_custom_call.1} parent=1 // pred_check_branch
      %74 = sbr.rel (%p72) target = $region29
    $region28: #{tpu_custom_call.1} parent=1 // pred_region
      %75 = vst [vmem:[#allocation8] sm:$0xff] 0.0
      %76 = vst [vmem:[#allocation9] sm:$0xff] 0.0
    $region29: #{tpu_custom_call.1} parent=1 // pred_fallthru
      _
    %v77 = vld [vmem:[#allocation5] sm:$0xff]
    %78 = vrot.lane.b32.xlu0 %v77, 1
    %v79 = vpop.permute.xlu0 %78
    %v80 = vlaneseq
    %v81 = vand.u32 %v80, 127
    %vm82 = vcmp.eq.s32.totalorder %v81, 0
    %vm83 = vcmp.gt.s32.totalorder %v79, 0
    %vm84 = vmor %vm82, %vm83
    %v85 = vld [vmem:[#allocation2] sm:$0xff]
    %v86 = vld [vmem:[#allocation7] sm:$0xff]
    %v87 = vmul.f32 %v85, %v86
    %v88 = vsel %vm84, %v87, 0.0
    %v89 = vsel %vm84, 1.0, 0.0
    %v90 = vld [vmem:[#allocation8] sm:$0xff]
    %v91 = vadd.f32 %v88, 0.0
    %v92 = vadd.f32 %v90, %v91
    %93 = vst [vmem:[#allocation8] sm:$0xff] %v92
    %v94 = vld [vmem:[#allocation9] sm:$0xff]
    %v95 = vadd.f32 %v89, 0.0
    %v96 = vadd.f32 %v94, %v95
    %97 = vst [vmem:[#allocation9] sm:$0xff] %v96
    // Predicated region
    $region30: #{tpu_custom_call.1} parent=1 // pred_check
      _
    $region31: #{tpu_custom_call.1} parent=1 // pred_check_branch
      %99 = sbr.rel (0) target = $region33
    $region32: #{tpu_custom_call.1} parent=1 // pred_region
      %101 = vsyncadd [#allocation4], 0
      %s103 = sshll.u32 [#allocation8], 4
      %s104 = int_to_ptr.vmem [resolvable:$true] %s103
      %s105 = sshll.u32 %s3, 4
      %s106 = int_to_ptr.hbm [resolvable:$true] %s105
      %108 = dma.vmem_to_hbm [thread:$0]  %s104, 128, %s106, [#allocation4]
    $region33: #{tpu_custom_call.1} parent=1 // pred_fallthru
      _
    // Predicated region
    $region34: #{tpu_custom_call.1} parent=1 // pred_check
      _
    $region35: #{tpu_custom_call.1} parent=1 // pred_check_branch
      %110 = sbr.rel (0) target = $region37
    $region36: #{tpu_custom_call.1} parent=1 // pred_region
      %112 = vsyncadd [#allocation10], 0
      %s114 = sshll.u32 [#allocation9], 4
      %s115 = int_to_ptr.vmem [resolvable:$true] %s114
      %s116 = sshll.u32 %s4, 4
      %s117 = int_to_ptr.hbm [resolvable:$true] %s116
      %119 = dma.vmem_to_hbm [thread:$0]  %s115, 128, %s117, [#allocation10]
    $region37: #{tpu_custom_call.1} parent=1 // pred_fallthru
      _
    // Predicated region
    $region38: #{tpu_custom_call.1} parent=1 // pred_check
      _
    $region39: #{tpu_custom_call.1} parent=1 // pred_check_branch
      %121 = sbr.rel (0) target = $region41
    $region40: #{tpu_custom_call.1} parent=1 // pred_region
      %123 = dma.done [#allocation4], 128
    $region41: #{tpu_custom_call.1} parent=1 // pred_fallthru
      _
    // Predicated region
    $region42: #{tpu_custom_call.1} parent=1 // pred_check
      _
    $region43: #{tpu_custom_call.1} parent=1 // pred_check_branch
      %125 = sbr.rel (0) target = $region45
    $region44: #{tpu_custom_call.1} parent=1 // pred_region
      %127 = dma.done [#allocation10], 128
    $region45: #{tpu_custom_call.1} parent=1 // pred_fallthru
      _
    %128 = vsyncpa [#allocation3], 1
    %129 = vsyncpa [#allocation6], 1
    %130 = vsyncpa [#allocation4], 1
    %131 = vsyncpa [#allocation10], 1

</llo_original>
